<compile_context>
chip_gen: v5e
topology: v5e:2x2
jax: 0.10.0
libtpu: 0.0.40
codegen_flags: <defaults>
</compile_context>

<pallas_src>
import jax
import jax.numpy as jnp
from jax.experimental import pallas as pl
from jax.experimental.pallas import tpu as pltpu

K_IN = 784      # 28*28
K_PAD = 896     # 7 * 128 (padded contraction dim)
H = 128         # hidden width
N_OUT = 10      # logits
N_PAD = 128     # lane-dense padded output width


def mlp_kernel(x_ref, w1_ref, b1_ref, w2_ref, b2_ref, o_ref):
    # hidden = sigmoid(x @ W1 + b1)   -- (TB, 896) @ (896, 128), f32 accumulate
    h = jnp.dot(x_ref[...], w1_ref[...], preferred_element_type=jnp.float32)
    h = jax.nn.sigmoid(h + b1_ref[...])
    # out = hidden @ W2 + b2          -- (TB, 128) @ (128, 128), f32 accumulate
    o = jnp.dot(h.astype(w2_ref.dtype), w2_ref[...],
                preferred_element_type=jnp.float32)
    o_ref[...] = (o + b2_ref[...]).astype(o_ref.dtype)


def mlp_forward(x, w1, b1, w2, b2, *, tb_max=512):
    """x: (B, C, H, W) float32; weights stored (in, out) like x @ W."""
    B = x.shape[0]
    x2d = x.reshape(B, -1)                                   # == torch x.view(B, -1)

    # --- pick batch tile: multiple of 16 (bf16 sublane pack), capped at tb_max ---
    b_small = ((B + 15) // 16) * 16
    TB = min(tb_max, b_small)
    B_pad = pl.cdiv(B, TB) * TB

    # --- bf16 inputs/weights, zero-padded to MXU/lane-friendly shapes ---
    x_p = jnp.zeros((B_pad, K_PAD), jnp.bfloat16)
    x_p = x_p.at[:B, :K_IN].set(x2d.astype(jnp.bfloat16))
    w1_p = jnp.zeros((K_PAD, H), jnp.bfloat16).at[:K_IN, :].set(w1.astype(jnp.bfloat16))
    w2_p = jnp.zeros((H, N_PAD), jnp.bfloat16).at[:, :N_OUT].set(w2.astype(jnp.bfloat16))
    b1_p = b1.reshape(1, H).astype(jnp.float32)
    b2_p = jnp.zeros((1, N_PAD), jnp.float32).at[:, :N_OUT].set(b2.reshape(1, N_OUT))

    grid = (B_pad // TB,)
    out = pl.pallas_call(
        mlp_kernel,
        out_shape=jax.ShapeDtypeStruct((B_pad, N_PAD), jnp.float32),
        grid=grid,
        in_specs=[
            pl.BlockSpec((TB, K_PAD), lambda i: (i, 0)),    # x: streamed per batch tile
            pl.BlockSpec((K_PAD, H), lambda i: (0, 0)),     # W1: resident
            pl.BlockSpec((1, H), lambda i: (0, 0)),         # b1: resident
            pl.BlockSpec((H, N_PAD), lambda i: (0, 0)),     # W2: resident
            pl.BlockSpec((1, N_PAD), lambda i: (0, 0)),     # b2: resident
        ],
        out_specs=pl.BlockSpec((TB, N_PAD), lambda i: (i, 0)),
        compiler_params=pltpu.CompilerParams(
            dimension_semantics=("parallel",)),
    )(x_p, w1_p, b1_p, w2_p, b2_p)

    return out[:B, :N_OUT]


def init_params(key):
    # Deterministic init mirroring nn.Linear's U(-1/sqrt(fan_in), 1/sqrt(fan_in)).
    k1, k2, k3, k4 = jax.random.split(key, 4)
    bound1 = 1.0 / jnp.sqrt(float(K_IN))
    bound2 = 1.0 / jnp.sqrt(float(H))
    # Stored as (in, out) so the kernel does x @ W directly (torch stores (out, in)).
    w1 = jax.random.uniform(k1, (K_IN, H), jnp.float32, -bound1, bound1)
    b1 = jax.random.uniform(k2, (1, H), jnp.float32, -bound1, bound1)
    w2 = jax.random.uniform(k3, (H, N_OUT), jnp.float32, -bound2, bound2)
    b2 = jax.random.uniform(k4, (1, N_OUT), jnp.float32, -bound2, bound2)
    return w1, b1, w2, b2


if __name__ == "__main__":
    key = jax.random.PRNGKey(0)
    kx, kp = jax.random.split(key)
    # Small MNIST-like batch: (batch=2, channels=1, 28, 28) -> flattened 784.
    x = jax.random.normal(kx, (2, 1, 28, 28), jnp.float32)
    w1, b1, w2, b2 = init_params(kp)

    out = jax.jit(mlp_forward)(x, w1, b1, w2, b2)
    out = jax.block_until_ready(out)

    # Reference in plain f32 JAX (same semantics as the PyTorch forward).
    ref = jax.nn.sigmoid(x.reshape(2, -1) @ w1 + b1) @ w2 + b2
    assert out.shape == (2, N_OUT)
    assert jnp.allclose(out, ref, atol=2e-2, rtol=2e-2), (
        f"max abs err {jnp.max(jnp.abs(out - ref))}")

    print("KERNEL_OK")
</pallas_src>

<mosaic_0001>
module attributes {stable_mosaic.version = 11 : i64} {
  func.func @mlp_kernel(%arg0: i32, %arg1: memref<16x896xbf16, #tpu.memory_space<vmem>>, %arg2: memref<896x128xbf16, #tpu.memory_space<vmem>>, %arg3: memref<1x128xf32, #tpu.memory_space<vmem>>, %arg4: memref<128x128xbf16, #tpu.memory_space<vmem>>, %arg5: memref<1x128xf32, #tpu.memory_space<vmem>>, %arg6: memref<16x128xf32, #tpu.memory_space<vmem>>) attributes {dimension_semantics = [#tpu.dimension_semantics<parallel>], iteration_bounds = array<i64: 1>, scalar_prefetch = 0 : i64, scratch_operands = 0 : i64, tpu.core_type = #tpu.core_type<tc>, window_params = [{transform_indices = @transform_0, window_bounds = array<i64: 16, 896>}, {pipeline_mode = #tpu.pipeline_mode<synchronous>, transform_indices = @transform_1, window_bounds = array<i64: 896, 128>}, {pipeline_mode = #tpu.pipeline_mode<synchronous>, transform_indices = @transform_2, window_bounds = array<i64: 1, 128>}, {pipeline_mode = #tpu.pipeline_mode<synchronous>, transform_indices = @transform_3, window_bounds = array<i64: 128, 128>}, {pipeline_mode = #tpu.pipeline_mode<synchronous>, transform_indices = @transform_4, window_bounds = array<i64: 1, 128>}, {transform_indices = @transform_5, window_bounds = array<i64: 16, 128>}]} {
    %c0 = arith.constant 0 : index
    %c0_0 = arith.constant 0 : index
    %0 = vector.load %arg1[%c0, %c0_0] : memref<16x896xbf16, #tpu.memory_space<vmem>>, vector<16x896xbf16>
    %c0_1 = arith.constant 0 : index
    %c0_2 = arith.constant 0 : index
    %1 = vector.load %arg2[%c0_1, %c0_2] : memref<896x128xbf16, #tpu.memory_space<vmem>>, vector<896x128xbf16>
    %cst = arith.constant dense<0.000000e+00> : vector<16x128xf32>
    %2 = tpu.matmul %0, %1, %cst {dimension_numbers = #tpu.dot_dimension_numbers<[1], [0], [0], [1], [0, 0, 1, 1], [], []>} : vector<16x896xbf16>, vector<896x128xbf16>, vector<16x128xf32> -> vector<16x128xf32>
    %c0_3 = arith.constant 0 : index
    %c0_4 = arith.constant 0 : index
    %3 = vector.load %arg3[%c0_3, %c0_4] : memref<1x128xf32, #tpu.memory_space<vmem>>, vector<1x128xf32>
    %4 = vector.broadcast %3 : vector<1x128xf32> to vector<16x128xf32>
    %5 = arith.addf %2, %4 : vector<16x128xf32>
    %6 = arith.negf %5 : vector<16x128xf32>
    %7 = math.exp %6 : vector<16x128xf32>
    %cst_5 = arith.constant 1.000000e+00 : f32
    %8 = vector.broadcast %cst_5 : f32 to vector<16x128xf32>
    %9 = arith.addf %8, %7 : vector<16x128xf32>
    %10 = arith.divf %8, %9 : vector<16x128xf32>
    %11 = arith.truncf %10 : vector<16x128xf32> to vector<16x128xbf16>
    %c0_6 = arith.constant 0 : index
    %c0_7 = arith.constant 0 : index
    %12 = vector.load %arg4[%c0_6, %c0_7] : memref<128x128xbf16, #tpu.memory_space<vmem>>, vector<128x128xbf16>
    %cst_8 = arith.constant dense<0.000000e+00> : vector<16x128xf32>
    %13 = tpu.matmul %11, %12, %cst_8 {dimension_numbers = #tpu.dot_dimension_numbers<[1], [0], [0], [1], [0, 0, 1, 1], [], []>} : vector<16x128xbf16>, vector<128x128xbf16>, vector<16x128xf32> -> vector<16x128xf32>
    %c0_9 = arith.constant 0 : index
    %c0_10 = arith.constant 0 : index
    %14 = vector.load %arg5[%c0_9, %c0_10] : memref<1x128xf32, #tpu.memory_space<vmem>>, vector<1x128xf32>
    %15 = vector.broadcast %14 : vector<1x128xf32> to vector<16x128xf32>
    %16 = arith.addf %13, %15 : vector<16x128xf32>
    %c0_11 = arith.constant 0 : index
    %c0_12 = arith.constant 0 : index
    %17 = vector.load %arg6[%c0_11, %c0_12] : memref<16x128xf32, #tpu.memory_space<vmem>>, vector<16x128xf32>
    tpu.vector_store %arg6[%c0_11, %c0_12], %16 {strides = array<i32>} : memref<16x128xf32, #tpu.memory_space<vmem>>, vector<16x128xf32>,
    return
  }
  func.func @transform_0(%arg0: i32) -> (i32, i32) {
    %c0_i32 = arith.constant 0 : i32
    %c0_i32_0 = arith.constant 0 : i32
    return %arg0, %c0_i32 : i32, i32
  }
  func.func @transform_1(%arg0: i32) -> (i32, i32) {
    %c0_i32 = arith.constant 0 : i32
    %c0_i32_0 = arith.constant 0 : i32
    %c0_i32_1 = arith.constant 0 : i32
    return %c0_i32, %c0_i32_0 : i32, i32
  }
  func.func @transform_2(%arg0: i32) -> (i32, i32) {
    %c0_i32 = arith.constant 0 : i32
    %c0_i32_0 = arith.constant 0 : i32
    %c0_i32_1 = arith.constant 0 : i32
    return %c0_i32, %c0_i32_0 : i32, i32
  }
  func.func @transform_3(%arg0: i32) -> (i32, i32) {
    %c0_i32 = arith.constant 0 : i32
    %c0_i32_0 = arith.constant 0 : i32
    %c0_i32_1 = arith.constant 0 : i32
    return %c0_i32, %c0_i32_0 : i32, i32
  }
  func.func @transform_4(%arg0: i32) -> (i32, i32) {
    %c0_i32 = arith.constant 0 : i32
    %c0_i32_0 = arith.constant 0 : i32
    %c0_i32_1 = arith.constant 0 : i32
    return %c0_i32, %c0_i32_0 : i32, i32
  }
  func.func @transform_5(%arg0: i32) -> (i32, i32) {
    %c0_i32 = arith.constant 0 : i32
    %c0_i32_0 = arith.constant 0 : i32
    return %arg0, %c0_i32 : i32, i32
  }
}

</mosaic_0001>

<llo_original>
// kernel: mlp_forward.1
$region0: #{mlp_forward.1}
  #allocation0 [shape = 'u32[]', space=smem, size = 0x4, offset = 0x4, fixed_abs, tag = 'smem constant byte address 0x4 - core index']
  #allocation1 [shape = 'u32[72,128]{1,0:T(1,128)}', space=vmem, size = 0x9000, scoped, tag = 'internal scratch']
  %s0 = inlined_call_operand.vmem [shape: bf16[16,896], index: 0, kind: input, shape index: {}]
  %s1 = inlined_call_operand.vmem [shape: bf16[896,128], index: 1, kind: input, shape index: {}]
  %s2 = inlined_call_operand.vmem [shape: f32[1,128], index: 2, kind: input, shape index: {}]
  %s3 = inlined_call_operand.vmem [shape: bf16[128,128], index: 3, kind: input, shape index: {}]
  %s4 = inlined_call_operand.vmem [shape: f32[1,128], index: 4, kind: input, shape index: {}]
  %s5 = inlined_call_operand.vmem [shape: f32[16,128], index: 5, kind: output, shape index: {}]
  %s6 = sld [smem:[#allocation0]]
  $region30: #{mlp_forward.1} parent=0
    _
  %s8 = ssub.s32 1, %s6
  %s9 = scalar_select 0, %s8, %s6
  // Predicated region
  $region2: #{mlp_forward.1} parent=0 // pred_check
    _
  $region3: #{mlp_forward.1} parent=0 // pred_check_branch
    %11 = sbr.rel (0) target = $region5
  $region4: #{mlp_forward.1} parent=0 // pred_region
    _
  $region5: #{mlp_forward.1} parent=0 // pred_fallthru
    _
  // Predicated region
  $region6: #{mlp_forward.1} parent=0 // pred_check
    _
  $region7: #{mlp_forward.1} parent=0 // pred_check_branch
    %13 = sbr.rel (0) target = $region9
  $region8: #{mlp_forward.1} parent=0 // pred_region
    _
  $region9: #{mlp_forward.1} parent=0 // pred_fallthru
    _
  // Predicated region
  $region10: #{mlp_forward.1} parent=0 // pred_check
    _
  $region11: #{mlp_forward.1} parent=0 // pred_check_branch
    %15 = sbr.rel (0) target = $region13
  $region12: #{mlp_forward.1} parent=0 // pred_region
    _
  $region13: #{mlp_forward.1} parent=0 // pred_fallthru
    _
  // Predicated region
  $region14: #{mlp_forward.1} parent=0 // pred_check
    _
  $region15: #{mlp_forward.1} parent=0 // pred_check_branch
    %17 = sbr.rel (0) target = $region17
  $region16: #{mlp_forward.1} parent=0 // pred_region
    _
  $region17: #{mlp_forward.1} parent=0 // pred_fallthru
    _
  // Predicated region
  $region18: #{mlp_forward.1} parent=0 // pred_check
    _
  $region19: #{mlp_forward.1} parent=0 // pred_check_branch
    %19 = sbr.rel (0) target = $region21
  $region20: #{mlp_forward.1} parent=0 // pred_region
    _
  $region21: #{mlp_forward.1} parent=0 // pred_fallthru
    _
  %v20 = vld [vmem:[%s0] sm:$0xff]
  %v21 = vld [vmem:[%s0 + $0x8] sm:$0xff]
  %v22 = vld [vmem:[%s0 + $0x10] sm:$0xff]
  %v23 = vld [vmem:[%s0 + $0x18] sm:$0xf]
  %v24 = vld [vmem:[%s0 + $0x1c] sm:$0xff]
  %v25 = vld [vmem:[%s0 + $0x24] sm:$0xff]
  %v26 = vld [vmem:[%s0 + $0x2c] sm:$0xff]
  %v27 = vld [vmem:[%s0 + $0x34] sm:$0xf]
  %v28 = vld [vmem:[%s1] sm:$0xf]
  %v29 = vld [vmem:[%s1 + $0x4] sm:$0xf]
  %v30 = vld [vmem:[%s1 + $0x8] sm:$0xf]
  %v31 = vld [vmem:[%s1 + $0xc] sm:$0xf]
  %v32 = vld [vmem:[%s1 + $0x10] sm:$0xf]
  %v33 = vld [vmem:[%s1 + $0x14] sm:$0xf]
  %v34 = vld [vmem:[%s1 + $0x18] sm:$0xf]
  %v35 = vld [vmem:[%s1 + $0x1c] sm:$0xf]
  %v36 = vld [vmem:[%s1 + $0x20] sm:$0xf]
  %v37 = vld [vmem:[%s1 + $0x24] sm:$0xf]
  %v38 = vld [vmem:[%s1 + $0x28] sm:$0xf]
  %v39 = vld [vmem:[%s1 + $0x2c] sm:$0xf]
  %v40 = vld [vmem:[%s1 + $0x30] sm:$0xf]
  %v41 = vld [vmem:[%s1 + $0x34] sm:$0xf]
  %v42 = vld [vmem:[%s1 + $0x38] sm:$0xf]
  %v43 = vld [vmem:[%s1 + $0x3c] sm:$0xf]
  %v44 = vld [vmem:[%s1 + $0x40] sm:$0xf]
  %v45 = vld [vmem:[%s1 + $0x44] sm:$0xf]
  %v46 = vld [vmem:[%s1 + $0x48] sm:$0xf]
  %v47 = vld [vmem:[%s1 + $0x4c] sm:$0xf]
  %v48 = vld [vmem:[%s1 + $0x50] sm:$0xf]
  %v49 = vld [vmem:[%s1 + $0x54] sm:$0xf]
  %v50 = vld [vmem:[%s1 + $0x58] sm:$0xf]
  %v51 = vld [vmem:[%s1 + $0x5c] sm:$0xf]
  %v52 = vld [vmem:[%s1 + $0x60] sm:$0xf]
  %v53 = vld [vmem:[%s1 + $0x64] sm:$0xf]
  %v54 = vld [vmem:[%s1 + $0x68] sm:$0xf]
  %v55 = vld [vmem:[%s1 + $0x6c] sm:$0xf]
  %v56 = vld [vmem:[%s1 + $0x70] sm:$0xf]
  %v57 = vld [vmem:[%s1 + $0x74] sm:$0xf]
  %v58 = vld [vmem:[%s1 + $0x78] sm:$0xf]
  %v59 = vld [vmem:[%s1 + $0x7c] sm:$0xf]
  %v60 = vld [vmem:[%s1 + $0x80] sm:$0xf]
  %v61 = vld [vmem:[%s1 + $0x84] sm:$0xf]
  %v62 = vld [vmem:[%s1 + $0x88] sm:$0xf]
  %v63 = vld [vmem:[%s1 + $0x8c] sm:$0xf]
  %v64 = vld [vmem:[%s1 + $0x90] sm:$0xf]
  %v65 = vld [vmem:[%s1 + $0x94] sm:$0xf]
  %v66 = vld [vmem:[%s1 + $0x98] sm:$0xf]
  %v67 = vld [vmem:[%s1 + $0x9c] sm:$0xf]
  %v68 = vld [vmem:[%s1 + $0xa0] sm:$0xf]
  %v69 = vld [vmem:[%s1 + $0xa4] sm:$0xf]
  %v70 = vld [vmem:[%s1 + $0xa8] sm:$0xf]
  %v71 = vld [vmem:[%s1 + $0xac] sm:$0xf]
  %v72 = vld [vmem:[%s1 + $0xb0] sm:$0xf]
  %v73 = vld [vmem:[%s1 + $0xb4] sm:$0xf]
  %v74 = vld [vmem:[%s1 + $0xb8] sm:$0xf]
  %v75 = vld [vmem:[%s1 + $0xbc] sm:$0xf]
  %v76 = vld [vmem:[%s1 + $0xc0] sm:$0xf]
  %v77 = vld [vmem:[%s1 + $0xc4] sm:$0xf]
  %v78 = vld [vmem:[%s1 + $0xc8] sm:$0xf]
  %v79 = vld [vmem:[%s1 + $0xcc] sm:$0xf]
  %v80 = vld [vmem:[%s1 + $0xd0] sm:$0xf]
  %v81 = vld [vmem:[%s1 + $0xd4] sm:$0xf]
  %v82 = vld [vmem:[%s1 + $0xd8] sm:$0xf]
  %v83 = vld [vmem:[%s1 + $0xdc] sm:$0xf]
  %v84 = vld [vmem:[%s1 + $0xe0] sm:$0xf]
  %v85 = vld [vmem:[%s1 + $0xe4] sm:$0xf]
  %v86 = vld [vmem:[%s1 + $0xe8] sm:$0xf]
  %v87 = vld [vmem:[%s1 + $0xec] sm:$0xf]
  %v88 = vld [vmem:[%s1 + $0xf0] sm:$0xf]
  %v89 = vld [vmem:[%s1 + $0xf4] sm:$0xf]
  %v90 = vld [vmem:[%s1 + $0xf8] sm:$0xf]
  %v91 = vld [vmem:[%s1 + $0xfc] sm:$0xf]
  %v92 = vld [vmem:[%s1 + $0x100] sm:$0xf]
  %v93 = vld [vmem:[%s1 + $0x104] sm:$0xf]
  %v94 = vld [vmem:[%s1 + $0x108] sm:$0xf]
  %v95 = vld [vmem:[%s1 + $0x10c] sm:$0xf]
  %v96 = vld [vmem:[%s1 + $0x110] sm:$0xf]
  %v97 = vld [vmem:[%s1 + $0x114] sm:$0xf]
  %v98 = vld [vmem:[%s1 + $0x118] sm:$0xf]
  %v99 = vld [vmem:[%s1 + $0x11c] sm:$0xf]
  %v100 = vld [vmem:[%s1 + $0x120] sm:$0xf]
  %v101 = vld [vmem:[%s1 + $0x124] sm:$0xf]
  %v102 = vld [vmem:[%s1 + $0x128] sm:$0xf]
  %v103 = vld [vmem:[%s1 + $0x12c] sm:$0xf]
  %v104 = vld [vmem:[%s1 + $0x130] sm:$0xf]
  %v105 = vld [vmem:[%s1 + $0x134] sm:$0xf]
  %v106 = vld [vmem:[%s1 + $0x138] sm:$0xf]
  %v107 = vld [vmem:[%s1 + $0x13c] sm:$0xf]
  %v108 = vld [vmem:[%s1 + $0x140] sm:$0xf]
  %v109 = vld [vmem:[%s1 + $0x144] sm:$0xf]
  %v110 = vld [vmem:[%s1 + $0x148] sm:$0xf]
  %v111 = vld [vmem:[%s1 + $0x14c] sm:$0xf]
  %v112 = vld [vmem:[%s1 + $0x150] sm:$0xf]
  %v113 = vld [vmem:[%s1 + $0x154] sm:$0xf]
  %v114 = vld [vmem:[%s1 + $0x158] sm:$0xf]
  %v115 = vld [vmem:[%s1 + $0x15c] sm:$0xf]
  %v116 = vld [vmem:[%s1 + $0x160] sm:$0xf]
  %v117 = vld [vmem:[%s1 + $0x164] sm:$0xf]
  %v118 = vld [vmem:[%s1 + $0x168] sm:$0xf]
  %v119 = vld [vmem:[%s1 + $0x16c] sm:$0xf]
  %v120 = vld [vmem:[%s1 + $0x170] sm:$0xf]
  %v121 = vld [vmem:[%s1 + $0x174] sm:$0xf]
  %v122 = vld [vmem:[%s1 + $0x178] sm:$0xf]
  %v123 = vld [vmem:[%s1 + $0x17c] sm:$0xf]
  %v124 = vld [vmem:[%s1 + $0x180] sm:$0xf]
  %v125 = vld [vmem:[%s1 + $0x184] sm:$0xf]
  %v126 = vld [vmem:[%s1 + $0x188] sm:$0xf]
  %v127 = vld [vmem:[%s1 + $0x18c] sm:$0xf]
  %v128 = vld [vmem:[%s1 + $0x190] sm:$0xf]
  %v129 = vld [vmem:[%s1 + $0x194] sm:$0xf]
  %v130 = vld [vmem:[%s1 + $0x198] sm:$0xf]
  %v131 = vld [vmem:[%s1 + $0x19c] sm:$0xf]
  %v132 = vld [vmem:[%s1 + $0x1a0] sm:$0xf]
  %v133 = vld [vmem:[%s1 + $0x1a4] sm:$0xf]
  %v134 = vld [vmem:[%s1 + $0x1a8] sm:$0xf]
  %v135 = vld [vmem:[%s1 + $0x1ac] sm:$0xf]
  %v136 = vld [vmem:[%s1 + $0x1b0] sm:$0xf]
  %v137 = vld [vmem:[%s1 + $0x1b4] sm:$0xf]
  %v138 = vld [vmem:[%s1 + $0x1b8] sm:$0xf]
  %v139 = vld [vmem:[%s1 + $0x1bc] sm:$0xf]
  %v140 = vld [vmem:[%s2] sm:$0x1]
  %v142 = vperm.slane %v140, 0
  %v152 = vunpack.c.l.b16 %v20
  %v153 = vunpack.c.h.b16 %v20
  %v154 = vunpack.c.l.b16 %v21
  %v155 = vunpack.c.h.b16 %v21
  %v156 = vunpack.c.l.b16 %v22
  %v157 = vunpack.c.h.b16 %v22
  %v158 = vunpack.c.l.b16 %v23
  %v159 = vunpack.c.l.b16 %v24
  %v160 = vunpack.c.h.b16 %v24
  %v161 = vunpack.c.l.b16 %v25
  %v162 = vunpack.c.h.b16 %v25
  %v163 = vunpack.c.l.b16 %v26
  %v164 = vunpack.c.h.b16 %v26
  %v165 = vunpack.c.l.b16 %v27
  %v166 = vpack.c.b16 %v159, %v152
  %v167 = vpack.c.b16 %v160, %v153
  %v168 = vpack.c.b16 %v161, %v154
  %v169 = vpack.c.b16 %v162, %v155
  %v170 = vpack.c.b16 %v163, %v156
  %v171 = vpack.c.b16 %v164, %v157
  %v172 = vpack.c.b16 %v165, %v158
  %v292 = vunpack.c.l.b16 %v28
  %v293 = vunpack.c.l.b16 %v29
  %v294 = vunpack.c.l.b16 %v30
  %v295 = vunpack.c.l.b16 %v31
  %v296 = vunpack.c.l.b16 %v32
  %v297 = vunpack.c.l.b16 %v33
  %v298 = vunpack.c.l.b16 %v34
  %v299 = vunpack.c.l.b16 %v35
  %v300 = vunpack.c.l.b16 %v36
  %v301 = vunpack.c.l.b16 %v37
  %v302 = vunpack.c.l.b16 %v38
  %v303 = vunpack.c.l.b16 %v39
  %v304 = vunpack.c.l.b16 %v40
  %v305 = vunpack.c.l.b16 %v41
  %v306 = vunpack.c.l.b16 %v42
  %v307 = vunpack.c.l.b16 %v43
  %v308 = vunpack.c.l.b16 %v44
  %v309 = vunpack.c.l.b16 %v45
  %v310 = vunpack.c.l.b16 %v46
  %v311 = vunpack.c.l.b16 %v47
  %v312 = vunpack.c.l.b16 %v48
  %v313 = vunpack.c.l.b16 %v49
  %v314 = vunpack.c.l.b16 %v50
  %v315 = vunpack.c.l.b16 %v51
  %v316 = vunpack.c.l.b16 %v52
  %v317 = vunpack.c.l.b16 %v53
  %v318 = vunpack.c.l.b16 %v54
  %v319 = vunpack.c.l.b16 %v55
  %v320 = vunpack.c.l.b16 %v56
  %v321 = vunpack.c.l.b16 %v57
  %v322 = vunpack.c.l.b16 %v58
  %v323 = vunpack.c.l.b16 %v59
  %v324 = vunpack.c.l.b16 %v60
  %v325 = vunpack.c.l.b16 %v61
  %v326 = vunpack.c.l.b16 %v62
  %v327 = vunpack.c.l.b16 %v63
  %v328 = vunpack.c.l.b16 %v64
  %v329 = vunpack.c.l.b16 %v65
  %v330 = vunpack.c.l.b16 %v66
  %v331 = vunpack.c.l.b16 %v67
  %v332 = vunpack.c.l.b16 %v68
  %v333 = vunpack.c.l.b16 %v69
  %v334 = vunpack.c.l.b16 %v70
  %v335 = vunpack.c.l.b16 %v71
  %v336 = vunpack.c.l.b16 %v72
  %v337 = vunpack.c.l.b16 %v73
  %v338 = vunpack.c.l.b16 %v74
  %v339 = vunpack.c.l.b16 %v75
  %v340 = vunpack.c.l.b16 %v76
  %v341 = vunpack.c.l.b16 %v77
  %v342 = vunpack.c.l.b16 %v78
  %v343 = vunpack.c.l.b16 %v79
  %v344 = vunpack.c.l.b16 %v80
  %v345 = vunpack.c.l.b16 %v81
  %v346 = vunpack.c.l.b16 %v82
  %v347 = vunpack.c.l.b16 %v83
  %v348 = vunpack.c.l.b16 %v84
  %v349 = vunpack.c.l.b16 %v85
  %v350 = vunpack.c.l.b16 %v86
  %v351 = vunpack.c.l.b16 %v87
  %v352 = vunpack.c.l.b16 %v88
  %v353 = vunpack.c.l.b16 %v89
  %v354 = vunpack.c.l.b16 %v90
  %v355 = vunpack.c.l.b16 %v91
  %v356 = vunpack.c.l.b16 %v92
  %v357 = vunpack.c.l.b16 %v93
  %v358 = vunpack.c.l.b16 %v94
  %v359 = vunpack.c.l.b16 %v95
  %v360 = vunpack.c.l.b16 %v96
  %v361 = vunpack.c.l.b16 %v97
  %v362 = vunpack.c.l.b16 %v98
  %v363 = vunpack.c.l.b16 %v99
  %v364 = vunpack.c.l.b16 %v100
  %v365 = vunpack.c.l.b16 %v101
  %v366 = vunpack.c.l.b16 %v102
  %v367 = vunpack.c.l.b16 %v103
  %v368 = vunpack.c.l.b16 %v104
  %v369 = vunpack.c.l.b16 %v105
  %v370 = vunpack.c.l.b16 %v106
  %v371 = vunpack.c.l.b16 %v107
  %v372 = vunpack.c.l.b16 %v108
  %v373 = vunpack.c.l.b16 %v109
  %v374 = vunpack.c.l.b16 %v110
  %v375 = vunpack.c.l.b16 %v111
  %v376 = vunpack.c.l.b16 %v112
  %v377 = vunpack.c.l.b16 %v113
  %v378 = vunpack.c.l.b16 %v114
  %v379 = vunpack.c.l.b16 %v115
  %v380 = vunpack.c.l.b16 %v116
  %v381 = vunpack.c.l.b16 %v117
  %v382 = vunpack.c.l.b16 %v118
  %v383 = vunpack.c.l.b16 %v119
  %v384 = vunpack.c.l.b16 %v120
  %v385 = vunpack.c.l.b16 %v121
  %v386 = vunpack.c.l.b16 %v122
  %v387 = vunpack.c.l.b16 %v123
  %v388 = vunpack.c.l.b16 %v124
  %v389 = vunpack.c.l.b16 %v125
  %v390 = vunpack.c.l.b16 %v126
  %v391 = vunpack.c.l.b16 %v127
  %v392 = vunpack.c.l.b16 %v128
  %v393 = vunpack.c.l.b16 %v129
  %v394 = vunpack.c.l.b16 %v130
  %v395 = vunpack.c.l.b16 %v131
  %v396 = vunpack.c.l.b16 %v132
  %v397 = vunpack.c.l.b16 %v133
  %v398 = vunpack.c.l.b16 %v134
  %v399 = vunpack.c.l.b16 %v135
  %v400 = vunpack.c.l.b16 %v136
  %v401 = vunpack.c.l.b16 %v137
  %v402 = vunpack.c.l.b16 %v138
  %v403 = vunpack.c.l.b16 %v139
  %v404 = vpack.c.b16 %v293, %v292
  %v405 = vpack.c.b16 %v295, %v294
  %v406 = vpack.c.b16 %v297, %v296
  %v407 = vpack.c.b16 %v299, %v298
  %v408 = vpack.c.b16 %v301, %v300
  %v409 = vpack.c.b16 %v303, %v302
  %v410 = vpack.c.b16 %v305, %v304
  %v411 = vpack.c.b16 %v307, %v306
  %v412 = vpack.c.b16 %v309, %v308
  %v413 = vpack.c.b16 %v311, %v310
  %v414 = vpack.c.b16 %v313, %v312
  %v415 = vpack.c.b16 %v315, %v314
  %v416 = vpack.c.b16 %v317, %v316
  %v417 = vpack.c.b16 %v319, %v318
  %v418 = vpack.c.b16 %v321, %v320
  %v419 = vpack.c.b16 %v323, %v322
  %v420 = vpack.c.b16 %v325, %v324
  %v421 = vpack.c.b16 %v327, %v326
  %v422 = vpack.c.b16 %v329, %v328
  %v423 = vpack.c.b16 %v331, %v330
  %v424 = vpack.c.b16 %v333, %v332
  %v425 = vpack.c.b16 %v335, %v334
  %v426 = vpack.c.b16 %v337, %v336
  %v427 = vpack.c.b16 %v339, %v338
  %v428 = vpack.c.b16 %v341, %v340
  %v429 = vpack.c.b16 %v343, %v342
  %v430 = vpack.c.b16 %v345, %v344
  %v431 = vpack.c.b16 %v347, %v346
  %v432 = vpack.c.b16 %v349, %v348
  %v433 = vpack.c.b16 %v351, %v350
  %v434 = vpack.c.b16 %v353, %v352
  %v435 = vpack.c.b16 %v355, %v354
  %v436 = vpack.c.b16 %v357, %v356
  %v437 = vpack.c.b16 %v359, %v358
  %v438 = vpack.c.b16 %v361, %v360
  %v439 = vpack.c.b16 %v363, %v362
  %v440 = vpack.c.b16 %v365, %v364
  %v441 = vpack.c.b16 %v367, %v366
  %v442 = vpack.c.b16 %v369, %v368
  %v443 = vpack.c.b16 %v371, %v370
  %v444 = vpack.c.b16 %v373, %v372
  %v445 = vpack.c.b16 %v375, %v374
  %v446 = vpack.c.b16 %v377, %v376
  %v447 = vpack.c.b16 %v379, %v378
  %v448 = vpack.c.b16 %v381, %v380
  %v449 = vpack.c.b16 %v383, %v382
  %v450 = vpack.c.b16 %v385, %v384
  %v451 = vpack.c.b16 %v387, %v386
  %v452 = vpack.c.b16 %v389, %v388
  %v453 = vpack.c.b16 %v391, %v390
  %v454 = vpack.c.b16 %v393, %v392
  %v455 = vpack.c.b16 %v395, %v394
  %v456 = vpack.c.b16 %v397, %v396
  %v457 = vpack.c.b16 %v399, %v398
  %v458 = vpack.c.b16 %v401, %v400
  %v459 = vpack.c.b16 %v403, %v402
  %516 = vmatpush.bf16.msra.mxu0 %v411
  %517 = vmatpush.bf16.msra.mxu0 %v410
  %518 = vmatpush.bf16.msra.mxu0 %v409
  %519 = vmatpush.bf16.msra.mxu0 %v408
  %520 = vmatpush.bf16.msra.mxu0 %v407
  %521 = vmatpush.bf16.msra.mxu0 %v406
  %522 = vmatpush.bf16.msra.mxu0 %v405
  %523 = vmatpush.bf16.msra.mxu0 %v404
  %524 = vmatmul.bf16.gmra.mxu0 %v166
  %v525 = vpop.f32.mrf.mxu0
  %v526 = vadd.f32 %v142, %v525
  %v527 = vpop.f32.mrf.mxu0
  %v528 = vadd.f32 %v142, %v527
  %529 = vdwg.mxu0
  %530 = vmatpush.bf16.msra.mxu0 %v419
  %531 = vmatpush.bf16.msra.mxu0 %v418
  %532 = vmatpush.bf16.msra.mxu0 %v417
  %533 = vmatpush.bf16.msra.mxu0 %v416
  %534 = vmatpush.bf16.msra.mxu0 %v415
  %535 = vmatpush.bf16.msra.mxu0 %v414
  %536 = vmatpush.bf16.msra.mxu0 %v413
  %537 = vmatpush.bf16.msra.mxu0 %v412
  %538 = vmatmul.bf16.gmra.mxu0 %v167
  %v539 = vpop.f32.mrf.mxu0
  %v540 = vadd.f32 %v526, %v539
  %v541 = vpop.f32.mrf.mxu0
  %v542 = vadd.f32 %v528, %v541
  %543 = vdwg.mxu0
  %544 = vmatpush.bf16.msra.mxu0 %v427
  %545 = vmatpush.bf16.msra.mxu0 %v426
  %546 = vmatpush.bf16.msra.mxu0 %v425
  %547 = vmatpush.bf16.msra.mxu0 %v424
  %548 = vmatpush.bf16.msra.mxu0 %v423
  %549 = vmatpush.bf16.msra.mxu0 %v422
  %550 = vmatpush.bf16.msra.mxu0 %v421
  %551 = vmatpush.bf16.msra.mxu0 %v420
  %552 = vmatmul.bf16.gmra.mxu0 %v168
  %v553 = vpop.f32.mrf.mxu0
  %v554 = vadd.f32 %v540, %v553
  %v555 = vpop.f32.mrf.mxu0
  %v556 = vadd.f32 %v542, %v555
  %557 = vdwg.mxu0
  %558 = vmatpush.bf16.msra.mxu0 %v435
  %559 = vmatpush.bf16.msra.mxu0 %v434
  %560 = vmatpush.bf16.msra.mxu0 %v433
  %561 = vmatpush.bf16.msra.mxu0 %v432
  %562 = vmatpush.bf16.msra.mxu0 %v431
  %563 = vmatpush.bf16.msra.mxu0 %v430
  %564 = vmatpush.bf16.msra.mxu0 %v429
  %565 = vmatpush.bf16.msra.mxu0 %v428
  %566 = vmatmul.bf16.gmra.mxu0 %v169
  %v567 = vpop.f32.mrf.mxu0
  %v568 = vadd.f32 %v554, %v567
  %v569 = vpop.f32.mrf.mxu0
  %v570 = vadd.f32 %v556, %v569
  %571 = vdwg.mxu0
  %572 = vmatpush.bf16.msra.mxu0 %v443
  %573 = vmatpush.bf16.msra.mxu0 %v442
  %574 = vmatpush.bf16.msra.mxu0 %v441
  %575 = vmatpush.bf16.msra.mxu0 %v440
  %576 = vmatpush.bf16.msra.mxu0 %v439
  %577 = vmatpush.bf16.msra.mxu0 %v438
  %578 = vmatpush.bf16.msra.mxu0 %v437
  %579 = vmatpush.bf16.msra.mxu0 %v436
  %580 = vmatmul.bf16.gmra.mxu0 %v170
  %v581 = vpop.f32.mrf.mxu0
  %v582 = vadd.f32 %v568, %v581
  %v583 = vpop.f32.mrf.mxu0
  %v584 = vadd.f32 %v570, %v583
  %585 = vdwg.mxu0
  %586 = vmatpush.bf16.msra.mxu0 %v451
  %587 = vmatpush.bf16.msra.mxu0 %v450
  %588 = vmatpush.bf16.msra.mxu0 %v449
  %589 = vmatpush.bf16.msra.mxu0 %v448
  %590 = vmatpush.bf16.msra.mxu0 %v447
  %591 = vmatpush.bf16.msra.mxu0 %v446
  %592 = vmatpush.bf16.msra.mxu0 %v445
  %593 = vmatpush.bf16.msra.mxu0 %v444
  %594 = vmatmul.bf16.gmra.mxu0 %v171
  %v595 = vpop.f32.mrf.mxu0
  %v596 = vadd.f32 %v582, %v595
  %v597 = vpop.f32.mrf.mxu0
  %v598 = vadd.f32 %v584, %v597
  %599 = vdwg.mxu0
  %600 = vmatpush.bf16.msra.mxu0 %v459
  %601 = vmatpush.bf16.msra.mxu0 %v458
  %602 = vmatpush.bf16.msra.mxu0 %v457
  %603 = vmatpush.bf16.msra.mxu0 %v456
  %604 = vmatpush.bf16.msra.mxu0 %v455
  %605 = vmatpush.bf16.msra.mxu0 %v454
  %606 = vmatpush.bf16.msra.mxu0 %v453
  %607 = vmatpush.bf16.msra.mxu0 %v452
  %608 = vmatmul.bf16.gmra.mxu0 %v172
  %v609 = vpop.f32.mrf.mxu0
  %v610 = vadd.f32 %v596, %v609
  %v611 = vpop.f32.mrf.mxu0
  %v612 = vadd.f32 %v598, %v611
  %613 = vdwg.mxu0
  %v614 = vxor.u32 %v610, 2147483648
  %v615 = vxor.u32 %v612, 2147483648
  %v616 = vmul.f32 %v614, 1.442695
  %v617 = vpow.pop %v616
  %v618 = vmul.f32 %v615, 1.442695
  %v619 = vpow.pop %v618
  %v620 = vadd.f32 %v617, 1.0
  %v621 = vadd.f32 %v619, 1.0
  %v622 = vrcp.pop %v620
  %v623 = vmul.f32 %v620, %v622
  %v624 = vsub.f32 1.0, %v623
  %v625 = vmul.f32 %v622, %v624
  %v626 = vadd.f32 %v622, %v625
  %vm627 = vweird.f32 %v620
  %vm628 = vweird.f32 %v622
  %vm629 = vmor %vm627, %vm628
  %v630 = vsel %vm629, %v622, %v626
  %v631 = vand.u32 2147483647, %v620
  %vm632 = vcmp.eq.f32.partialorder %v631, 8.507059e+37
  %v633 = vand.u32 %v620, 2147483648
  %v634 = vor.u32 1.1754944e-38, %v633
  %v635 = vsel %vm632, %v634, %v630
  %v636 = vmul.f32 1.0, %v635
  %v637 = vrcp.pop %v621
  %v638 = vmul.f32 %v621, %v637
  %v639 = vsub.f32 1.0, %v638
  %v640 = vmul.f32 %v637, %v639
  %v641 = vadd.f32 %v637, %v640
  %vm642 = vweird.f32 %v621
  %vm643 = vweird.f32 %v637
  %vm644 = vmor %vm642, %vm643
  %v645 = vsel %vm644, %v637, %v641
  %v646 = vand.u32 2147483647, %v621
  %vm647 = vcmp.eq.f32.partialorder %v646, 8.507059e+37
  %v648 = vand.u32 %v621, 2147483648
  %v649 = vor.u32 1.1754944e-38, %v648
  %v650 = vsel %vm647, %v649, %v645
  %v651 = vmul.f32 1.0, %v650
  %v652 = vpack.c.bf16 %v651, %v636
  %v653 = vld [vmem:[%s3] sm:$0xf]
  %v654 = vld [vmem:[%s3 + $0x4] sm:$0xf]
  %v655 = vld [vmem:[%s3 + $0x8] sm:$0xf]
  %v656 = vld [vmem:[%s3 + $0xc] sm:$0xf]
  %v657 = vld [vmem:[%s3 + $0x10] sm:$0xf]
  %v658 = vld [vmem:[%s3 + $0x14] sm:$0xf]
  %v659 = vld [vmem:[%s3 + $0x18] sm:$0xf]
  %v660 = vld [vmem:[%s3 + $0x1c] sm:$0xf]
  %v661 = vld [vmem:[%s3 + $0x20] sm:$0xf]
  %v662 = vld [vmem:[%s3 + $0x24] sm:$0xf]
  %v663 = vld [vmem:[%s3 + $0x28] sm:$0xf]
  %v664 = vld [vmem:[%s3 + $0x2c] sm:$0xf]
  %v665 = vld [vmem:[%s3 + $0x30] sm:$0xf]
  %v666 = vld [vmem:[%s3 + $0x34] sm:$0xf]
  %v667 = vld [vmem:[%s3 + $0x38] sm:$0xf]
  %v668 = vld [vmem:[%s3 + $0x3c] sm:$0xf]
  %v669 = vld [vmem:[%s4] sm:$0x1]
  %v671 = vperm.slane %v669, 0
  %v689 = vunpack.c.l.b16 %v653
  %v690 = vunpack.c.l.b16 %v654
  %v691 = vunpack.c.l.b16 %v655
  %v692 = vunpack.c.l.b16 %v656
  %v693 = vunpack.c.l.b16 %v657
  %v694 = vunpack.c.l.b16 %v658
  %v695 = vunpack.c.l.b16 %v659
  %v696 = vunpack.c.l.b16 %v660
  %v697 = vunpack.c.l.b16 %v661
  %v698 = vunpack.c.l.b16 %v662
  %v699 = vunpack.c.l.b16 %v663
  %v700 = vunpack.c.l.b16 %v664
  %v701 = vunpack.c.l.b16 %v665
  %v702 = vunpack.c.l.b16 %v666
  %v703 = vunpack.c.l.b16 %v667
  %v704 = vunpack.c.l.b16 %v668
  %v705 = vpack.c.b16 %v690, %v689
  %v706 = vpack.c.b16 %v692, %v691
  %v707 = vpack.c.b16 %v694, %v693
  %v708 = vpack.c.b16 %v696, %v695
  %v709 = vpack.c.b16 %v698, %v697
  %v710 = vpack.c.b16 %v700, %v699
  %v711 = vpack.c.b16 %v702, %v701
  %v712 = vpack.c.b16 %v704, %v703
  %721 = vmatpush.bf16.msra.mxu0 %v712
  %722 = vmatpush.bf16.msra.mxu0 %v711
  %723 = vmatpush.bf16.msra.mxu0 %v710
  %724 = vmatpush.bf16.msra.mxu0 %v709
  %725 = vmatpush.bf16.msra.mxu0 %v708
  %726 = vmatpush.bf16.msra.mxu0 %v707
  %727 = vmatpush.bf16.msra.mxu0 %v706
  %728 = vmatpush.bf16.msra.mxu0 %v705
  %729 = vmatmul.bf16.gmra.mxu0 %v652
  %v730 = vpop.f32.mrf.mxu0
  %v731 = vadd.f32 %v671, %v730
  %v732 = vpop.f32.mrf.mxu0
  %v733 = vadd.f32 %v671, %v732
  %734 = vdwg.mxu0
  %735 = vst [vmem:[%s5] sm:$0xff] %v731
  %736 = vst [vmem:[%s5 + $0x8] sm:$0xff] %v733
  // Predicated region
  $region22: #{mlp_forward.1} parent=0 // pred_check
    _
  $region23: #{mlp_forward.1} parent=0 // pred_check_branch
    %738 = sbr.rel (0) target = $region25
  $region24: #{mlp_forward.1} parent=0 // pred_region
    _
  $region25: #{mlp_forward.1} parent=0 // pred_fallthru
    _
  // Predicated region
  $region26: #{mlp_forward.1} parent=0 // pred_check
    _
  $region27: #{mlp_forward.1} parent=0 // pred_check_branch
    %740 = sbr.rel (0) target = $region29
  $region28: #{mlp_forward.1} parent=0 // pred_region
    _
  $region29: #{mlp_forward.1} parent=0 // pred_fallthru
    _

</llo_original>
